<compile_context>
chip_gen: v5e
topology: v5e:2x2
jax: 0.10.0
libtpu: 0.0.40
codegen_flags: <defaults>
</compile_context>

<pallas_src>
import functools

import jax
import jax.numpy as jnp
from jax import lax
from jax.experimental import pallas as pl
from jax.experimental.pallas import tpu as pltpu


def _round_up(x, m):
    return ((x + m - 1) // m) * m


def _mmd_rbf_tile_kernel(neg_inv_bw_ref, xr_ref, xc_ref, sqc_ref, out_ref,
                         acc_ref, *, b, n, tm, kernel_num):
    """One (row-block i, col-block j) tile of the multi-bandwidth RBF kernel.

    neg_inv_bw_ref : SMEM f32[kernel_num]  -- precomputed -1/bw_i scalars
    xr_ref         : VMEM f32[tm, D]       -- row block of `total`
    xc_ref         : VMEM f32[tm, D]       -- col block of `total`
    sqc_ref        : VMEM f32[1, tm]       -- squared norms of the col block
    out_ref        : VMEM f32[1, 8, 128]   -- per-row-block signed partial sum
    acc_ref        : VMEM f32[8, 128]      -- scratch accumulator (over j)
    """
    i = pl.program_id(0)
    j = pl.program_id(1)

    @pl.when(j == 0)
    def _():
        acc_ref[...] = jnp.zeros_like(acc_ref)

    xr = xr_ref[...]                                           # [tm, D]
    xc = xc_ref[...]                                           # [tm, D]

    # Gram tile on the MXU, contracting the feature dim directly (no x.T).
    gram = lax.dot_general(
        xr, xc,
        dimension_numbers=(((1,), (1,)), ((), ())),
        preferred_element_type=jnp.float32)                    # [tm, tm]

    sq_r = jnp.sum(xr * xr, axis=1, keepdims=True)             # [tm, 1]
    l2 = jnp.maximum(sq_r + sqc_ref[...] - 2.0 * gram, 0.0)    # [tm, tm]

    # Multi-bandwidth Gaussian kernel sum; scalar reciprocal hoisted out of
    # the element-wise path (exp only, no per-element divide).
    kern = jnp.exp(l2 * neg_inv_bw_ref[0])
    for k in range(1, kernel_num):
        kern = kern + jnp.exp(l2 * neg_inv_bw_ref[k])

    # ±1 sign weights (+1 source rows, -1 target rows, 0 padded rows):
    #   XX + YY - XY - YX == (s^T K s) / b^2
    rows = i * tm + lax.broadcasted_iota(jnp.int32, (xr.shape[0], 1), 0)
    cols = j * tm + lax.broadcasted_iota(jnp.int32, (1, xc.shape[0]), 1)
    s_r = jnp.where(rows < b, 1.0, jnp.where(rows < n, -1.0, 0.0))
    s_c = jnp.where(cols < b, 1.0, jnp.where(cols < n, -1.0, 0.0))
    s_r = s_r.astype(jnp.float32)
    s_c = s_c.astype(jnp.float32)

    rowsum = jnp.sum(kern * s_c, axis=1, keepdims=True)        # [tm, 1]
    acc_ref[...] += jnp.sum(rowsum * s_r)                      # scalar bcast

    @pl.when(j == pl.num_programs(1) - 1)
    def _():
        out_ref[0] = acc_ref[...]


def mmd_loss_rbf(source, target, kernel_mul=2.0, kernel_num=5, tile=256):
    """RBF-MMD loss matching MMD_loss(kernel_type='rbf').forward(source, target)."""
    # TODO(synk): kernel_type='linear' branch (linear_mmd2) not implemented;
    # the module's default forward path is 'rbf'.
    assert source.shape == target.shape and source.ndim == 2
    kernel_mul = float(kernel_mul)
    kernel_num = int(kernel_num)

    source = source.astype(jnp.float32)
    target = target.astype(jnp.float32)
    total = jnp.concatenate([source, target], axis=0)
    n, d = total.shape
    b = source.shape[0]

    # Closed-form data-dependent bandwidth (fix_sigma=None path):
    #   sum(L2) = 2*N*sum_i ||x_i||^2 - 2*||sum_i x_i||^2   (O(N*D))
    sq = jnp.sum(total * total, axis=1)                        # [N]
    colsum = jnp.sum(total, axis=0)                            # [D]
    l2_sum = 2.0 * n * jnp.sum(sq) - 2.0 * jnp.sum(colsum * colsum)
    bandwidth = l2_sum / float(n * n - n)
    bandwidth = bandwidth / (kernel_mul ** (kernel_num // 2))
    neg_inv_bw = (-1.0 / (bandwidth *
                          (kernel_mul ** jnp.arange(kernel_num, dtype=jnp.float32)))
                  ).astype(jnp.float32)

    # Tile / pad the sample axis. Padded rows are zero features with sign 0,
    # so they contribute nothing to the signed sum.
    if n <= tile:
        tm = _round_up(n, 8)
        n_pad = tm
    else:
        tm = tile
        n_pad = _round_up(n, tile)
    pad = n_pad - n
    total_p = jnp.pad(total, ((0, pad), (0, 0))) if pad else total
    sq_row = (jnp.pad(sq, (0, pad)) if pad else sq).reshape(1, n_pad)
    sq_row = sq_row.astype(jnp.float32)

    num_i = n_pad // tm
    num_j = n_pad // tm

    kernel = functools.partial(
        _mmd_rbf_tile_kernel,
        b=int(b), n=int(n), tm=int(tm), kernel_num=kernel_num)

    out = pl.pallas_call(
        kernel,
        out_shape=jax.ShapeDtypeStruct((num_i, 8, 128), jnp.float32),
        grid=(num_i, num_j),
        in_specs=[
            pl.BlockSpec(memory_space=pltpu.MemorySpace.SMEM),   # neg_inv_bw
            pl.BlockSpec((tm, d), lambda i, j: (i, 0)),          # row block
            pl.BlockSpec((tm, d), lambda i, j: (j, 0)),          # col block
            pl.BlockSpec((1, tm), lambda i, j: (0, j)),          # col sq-norms
        ],
        out_specs=pl.BlockSpec((1, 8, 128), lambda i, j: (i, 0, 0)),
        scratch_shapes=[pltpu.VMEM((8, 128), jnp.float32)],
        compiler_params=pltpu.CompilerParams(
            dimension_semantics=("parallel", "arbitrary"),
        ),
    )(neg_inv_bw, total_p, total_p, sq_row)

    return jnp.sum(out[:, 0, 0]) / float(b * b)


def _mmd_loss_rbf_reference(source, target, kernel_mul=2.0, kernel_num=5):
    """Pure-JAX reference mirroring the PyTorch forward pass."""
    total = jnp.concatenate([source, target], axis=0).astype(jnp.float32)
    n = total.shape[0]
    b = source.shape[0]
    diff = total[None, :, :] - total[:, None, :]
    l2 = jnp.sum(diff * diff, axis=2)
    bandwidth = jnp.sum(l2) / (n * n - n)
    bandwidth = bandwidth / (kernel_mul ** (kernel_num // 2))
    kern = sum(jnp.exp(-l2 / (bandwidth * kernel_mul ** i)) for i in range(kernel_num))
    xx = jnp.mean(kern[:b, :b])
    yy = jnp.mean(kern[b:, b:])
    xy = jnp.mean(kern[:b, b:])
    yx = jnp.mean(kern[b:, :b])
    return xx + yy - xy - yx


if __name__ == "__main__":
    key = jax.random.PRNGKey(0)
    k1, k2, k3, k4 = jax.random.split(key, 4)

    # Small case (single tile).
    batch, hidden = 8, 32
    source = jax.random.normal(k1, (batch, hidden), dtype=jnp.float32)
    target = jax.random.normal(k2, (batch, hidden), dtype=jnp.float32) + 0.5

    loss = jax.block_until_ready(mmd_loss_rbf(source, target))
    ref = jax.block_until_ready(_mmd_loss_rbf_reference(source, target))
    assert jnp.allclose(loss, ref, rtol=1e-4, atol=1e-5), (loss, ref)

    # Larger case exercising the tiled (multi-block, padded) path.
    batch2, hidden2 = 300, 64
    source2 = jax.random.normal(k3, (batch2, hidden2), dtype=jnp.float32)
    target2 = jax.random.normal(k4, (batch2, hidden2), dtype=jnp.float32) + 0.5

    loss2 = jax.block_until_ready(mmd_loss_rbf(source2, target2))
    ref2 = jax.block_until_ready(_mmd_loss_rbf_reference(source2, target2))
    assert jnp.allclose(loss2, ref2, rtol=1e-3, atol=1e-5), (loss2, ref2)

    print("KERNEL_OK")
</pallas_src>

<mosaic_0001>
module attributes {stable_mosaic.version = 11 : i64} {
  func.func @_mmd_rbf_tile_kernel(%arg0: i32, %arg1: i32, %arg2: memref<5xf32, #tpu.memory_space<smem>>, %arg3: memref<16x32xf32, #tpu.memory_space<vmem>>, %arg4: memref<16x32xf32, #tpu.memory_space<vmem>>, %arg5: memref<1x16xf32, #tpu.memory_space<vmem>>, %arg6: memref<1x8x128xf32, #tpu.memory_space<vmem>>, %arg7: memref<8x128xf32, #tpu.memory_space<vmem>>) attributes {dimension_semantics = [#tpu.dimension_semantics<parallel>, #tpu.dimension_semantics<arbitrary>], iteration_bounds = array<i64: 1, 1>, scalar_prefetch = 0 : i64, scratch_operands = 1 : i64, tpu.core_type = #tpu.core_type<tc>, window_params = [{transform_indices = @transform_0, window_bounds = array<i64: 5>}, {transform_indices = @transform_1, window_bounds = array<i64: 16, 32>}, {transform_indices = @transform_2, window_bounds = array<i64: 16, 32>}, {transform_indices = @transform_3, window_bounds = array<i64: 1, 16>}, {transform_indices = @transform_4, window_bounds = array<i64: 1, 8, 128>}]} {
    %c0_i32 = arith.constant 0 : i32
    %0 = arith.cmpi eq, %arg1, %c0_i32 : i32
    %1 = arith.extui %0 : i1 to i32
    %c0_i32_0 = arith.constant 0 : i32
    %2 = arith.cmpi ne, %1, %c0_i32_0 : i32
    scf.if %2 {
      %cst_28 = arith.constant 0.000000e+00 : f32
      %84 = vector.broadcast %cst_28 : f32 to vector<8x128xf32>
      %c0_29 = arith.constant 0 : index
      %c0_30 = arith.constant 0 : index
      %85 = vector.load %arg7[%c0_29, %c0_30] : memref<8x128xf32, #tpu.memory_space<vmem>>, vector<8x128xf32>
      tpu.vector_store %arg7[%c0_29, %c0_30], %84 {strides = array<i32>} : memref<8x128xf32, #tpu.memory_space<vmem>>, vector<8x128xf32>,
    } else {
    }
    %c0 = arith.constant 0 : index
    %c0_1 = arith.constant 0 : index
    %3 = vector.load %arg3[%c0, %c0_1] : memref<16x32xf32, #tpu.memory_space<vmem>>, vector<16x32xf32>
    %c0_2 = arith.constant 0 : index
    %c0_3 = arith.constant 0 : index
    %4 = vector.load %arg4[%c0_2, %c0_3] : memref<16x32xf32, #tpu.memory_space<vmem>>, vector<16x32xf32>
    %cst = arith.constant dense<0.000000e+00> : vector<16x16xf32>
    %5 = tpu.matmul %3, %4, %cst {dimension_numbers = #tpu.dot_dimension_numbers<[1], [1], [0], [0], [0, 0, 1, 0], [], []>} : vector<16x32xf32>, vector<16x32xf32>, vector<16x16xf32> -> vector<16x16xf32>
    %6 = arith.mulf %3, %3 : vector<16x32xf32>
    %cst_4 = arith.constant dense<0.000000e+00> : vector<16xf32>
    %7 = vector.multi_reduction <add>, %6, %cst_4 [1] : vector<16x32xf32> to vector<16xf32>
    %8 = vector.shape_cast %7 : vector<16xf32> to vector<16x1xf32>
    %c0_5 = arith.constant 0 : index
    %c0_6 = arith.constant 0 : index
    %9 = vector.load %arg5[%c0_5, %c0_6] : memref<1x16xf32, #tpu.memory_space<vmem>>, vector<1x16xf32>
    %10 = vector.broadcast %8 : vector<16x1xf32> to vector<16x16xf32>
    %11 = vector.broadcast %9 : vector<1x16xf32> to vector<16x16xf32>
    %12 = arith.addf %10, %11 : vector<16x16xf32>
    %cst_7 = arith.constant 2.000000e+00 : f32
    %13 = vector.broadcast %cst_7 : f32 to vector<16x16xf32>
    %14 = arith.mulf %13, %5 : vector<16x16xf32>
    %15 = arith.subf %12, %14 : vector<16x16xf32>
    %cst_8 = arith.constant 0.000000e+00 : f32
    %16 = vector.broadcast %cst_8 : f32 to vector<16x16xf32>
    %17 = arith.maximumf %15, %16 : vector<16x16xf32>
    %c0_9 = arith.constant 0 : index
    %18 = memref.load %arg2[%c0_9] : memref<5xf32, #tpu.memory_space<smem>>
    %19 = vector.broadcast %18 : f32 to vector<16x16xf32>
    %20 = arith.mulf %17, %19 : vector<16x16xf32>
    %21 = math.exp %20 : vector<16x16xf32>
    %c1 = arith.constant 1 : index
    %22 = memref.load %arg2[%c1] : memref<5xf32, #tpu.memory_space<smem>>
    %23 = vector.broadcast %22 : f32 to vector<16x16xf32>
    %24 = arith.mulf %17, %23 : vector<16x16xf32>
    %25 = math.exp %24 : vector<16x16xf32>
    %26 = arith.addf %21, %25 : vector<16x16xf32>
    %c2 = arith.constant 2 : index
    %27 = memref.load %arg2[%c2] : memref<5xf32, #tpu.memory_space<smem>>
    %28 = vector.broadcast %27 : f32 to vector<16x16xf32>
    %29 = arith.mulf %17, %28 : vector<16x16xf32>
    %30 = math.exp %29 : vector<16x16xf32>
    %31 = arith.addf %26, %30 : vector<16x16xf32>
    %c3 = arith.constant 3 : index
    %32 = memref.load %arg2[%c3] : memref<5xf32, #tpu.memory_space<smem>>
    %33 = vector.broadcast %32 : f32 to vector<16x16xf32>
    %34 = arith.mulf %17, %33 : vector<16x16xf32>
    %35 = math.exp %34 : vector<16x16xf32>
    %36 = arith.addf %31, %35 : vector<16x16xf32>
    %c4 = arith.constant 4 : index
    %37 = memref.load %arg2[%c4] : memref<5xf32, #tpu.memory_space<smem>>
    %38 = vector.broadcast %37 : f32 to vector<16x16xf32>
    %39 = arith.mulf %17, %38 : vector<16x16xf32>
    %40 = math.exp %39 : vector<16x16xf32>
    %41 = arith.addf %36, %40 : vector<16x16xf32>
    %c16_i32 = arith.constant 16 : i32
    %42 = arith.muli %arg0, %c16_i32 : i32
    %43 = tpu.iota {dimensions = array<i32: 0>} : vector<16x1xi32>
    %44 = vector.broadcast %42 : i32 to vector<16x1xi32>
    %45 = arith.addi %44, %43 : vector<16x1xi32>
    %c16_i32_10 = arith.constant 16 : i32
    %46 = arith.muli %arg1, %c16_i32_10 : i32
    %47 = tpu.iota {dimensions = array<i32: 1>} : vector<1x16xi32>
    %48 = vector.broadcast %46 : i32 to vector<1x16xi32>
    %49 = arith.addi %48, %47 : vector<1x16xi32>
    %c8_i32 = arith.constant 8 : i32
    %50 = vector.broadcast %c8_i32 : i32 to vector<16x1xi32>
    %51 = arith.cmpi slt, %45, %50 : vector<16x1xi32>
    %c16_i32_11 = arith.constant 16 : i32
    %52 = vector.broadcast %c16_i32_11 : i32 to vector<16x1xi32>
    %53 = arith.cmpi slt, %45, %52 : vector<16x1xi32>
    %cst_12 = arith.constant -1.000000e+00 : f32
    %cst_13 = arith.constant 0.000000e+00 : f32
    %54 = vector.broadcast %cst_12 : f32 to vector<16x1xf32>
    %55 = vector.broadcast %cst_13 : f32 to vector<16x1xf32>
    %56 = arith.select %53, %54, %55 : vector<16x1xi1>, vector<16x1xf32>
    %cst_14 = arith.constant 1.000000e+00 : f32
    %57 = vector.broadcast %cst_14 : f32 to vector<16x1xf32>
    %58 = arith.select %51, %57, %56 : vector<16x1xi1>, vector<16x1xf32>
    %c8_i32_15 = arith.constant 8 : i32
    %59 = vector.broadcast %c8_i32_15 : i32 to vector<1x16xi32>
    %60 = arith.cmpi slt, %49, %59 : vector<1x16xi32>
    %c16_i32_16 = arith.constant 16 : i32
    %61 = vector.broadcast %c16_i32_16 : i32 to vector<1x16xi32>
    %62 = arith.cmpi slt, %49, %61 : vector<1x16xi32>
    %cst_17 = arith.constant -1.000000e+00 : f32
    %cst_18 = arith.constant 0.000000e+00 : f32
    %63 = vector.broadcast %cst_17 : f32 to vector<1x16xf32>
    %64 = vector.broadcast %cst_18 : f32 to vector<1x16xf32>
    %65 = arith.select %62, %63, %64 : vector<1x16xi1>, vector<1x16xf32>
    %cst_19 = arith.constant 1.000000e+00 : f32
    %66 = vector.broadcast %cst_19 : f32 to vector<1x16xf32>
    %67 = arith.select %60, %66, %65 : vector<1x16xi1>, vector<1x16xf32>
    %68 = vector.broadcast %67 : vector<1x16xf32> to vector<16x16xf32>
    %69 = arith.mulf %41, %68 : vector<16x16xf32>
    %cst_20 = arith.constant dense<0.000000e+00> : vector<16xf32>
    %70 = vector.multi_reduction <add>, %69, %cst_20 [1] : vector<16x16xf32> to vector<16xf32>
    %71 = vector.shape_cast %70 : vector<16xf32> to vector<16x1xf32>
    %c0_21 = arith.constant 0 : index
    %c0_22 = arith.constant 0 : index
    %72 = vector.load %arg7[%c0_21, %c0_22] : memref<8x128xf32, #tpu.memory_space<vmem>>, vector<8x128xf32>
    %73 = arith.mulf %71, %58 : vector<16x1xf32>
    %74 = vector.shape_cast %73 : vector<16x1xf32> to vector<1x16x1xf32>
    %cst_23 = arith.constant dense<0.000000e+00> : vector<1xf32>
    %75 = vector.multi_reduction <add>, %74, %cst_23 [1, 2] : vector<1x16x1xf32> to vector<1xf32>
    %76 = vector.shape_cast %75 : vector<1xf32> to vector<1x1x1xf32>
    %77 = vector.extract %76[0, 0, 0] : f32 from vector<1x1x1xf32>
    %78 = vector.broadcast %77 : f32 to vector<8x128xf32>
    %79 = arith.addf %72, %78 : vector<8x128xf32>
    %c0_24 = arith.constant 0 : index
    %c0_25 = arith.constant 0 : index
    %80 = vector.load %arg7[%c0_24, %c0_25] : memref<8x128xf32, #tpu.memory_space<vmem>>, vector<8x128xf32>
    tpu.vector_store %arg7[%c0_24, %c0_25], %79 {strides = array<i32>} : memref<8x128xf32, #tpu.memory_space<vmem>>, vector<8x128xf32>,
    %c0_i32_26 = arith.constant 0 : i32
    %81 = arith.cmpi eq, %arg1, %c0_i32_26 : i32
    %82 = arith.extui %81 : i1 to i32
    %c0_i32_27 = arith.constant 0 : i32
    %83 = arith.cmpi ne, %82, %c0_i32_27 : i32
    scf.if %83 {
      %c0_28 = arith.constant 0 : index
      %c0_29 = arith.constant 0 : index
      %84 = vector.load %arg7[%c0_28, %c0_29] : memref<8x128xf32, #tpu.memory_space<vmem>>, vector<8x128xf32>
      %c0_30 = arith.constant 0 : index
      %c0_31 = arith.constant 0 : index
      %c0_32 = arith.constant 0 : index
      %85 = vector.load %arg6[%c0_30, %c0_31, %c0_32] : memref<1x8x128xf32, #tpu.memory_space<vmem>>, vector<1x8x128xf32>
      %86 = vector.shape_cast %85 : vector<1x8x128xf32> to vector<8x128xf32>
      %87 = vector.shape_cast %84 : vector<8x128xf32> to vector<1x8x128xf32>
      tpu.vector_store %arg6[%c0_30, %c0_31, %c0_32], %87 {strides = array<i32>} : memref<1x8x128xf32, #tpu.memory_space<vmem>>, vector<1x8x128xf32>,
    } else {
    }
    return
  }
  func.func @transform_0(%arg0: i32, %arg1: i32) -> i32 {
    %c0_i32 = arith.constant 0 : i32
    %c0_i32_0 = arith.constant 0 : i32
    return %c0_i32 : i32
  }
  func.func @transform_1(%arg0: i32, %arg1: i32) -> (i32, i32) {
    %c0_i32 = arith.constant 0 : i32
    %c0_i32_0 = arith.constant 0 : i32
    return %arg0, %c0_i32 : i32, i32
  }
  func.func @transform_2(%arg0: i32, %arg1: i32) -> (i32, i32) {
    %c0_i32 = arith.constant 0 : i32
    %c0_i32_0 = arith.constant 0 : i32
    return %arg1, %c0_i32 : i32, i32
  }
  func.func @transform_3(%arg0: i32, %arg1: i32) -> (i32, i32) {
    %c0_i32 = arith.constant 0 : i32
    %c0_i32_0 = arith.constant 0 : i32
    return %c0_i32, %arg1 : i32, i32
  }
  func.func @transform_4(%arg0: i32, %arg1: i32) -> (i32, i32, i32) {
    %c0_i32 = arith.constant 0 : i32
    %c0_i32_0 = arith.constant 0 : i32
    %c0_i32_1 = arith.constant 0 : i32
    return %arg0, %c0_i32, %c0_i32_0 : i32, i32, i32
  }
}

</mosaic_0001>

<llo_original>
// kernel: tpu_custom_call.1
$region0: #{tpu_custom_call.1}
  #allocation0 [shape = 'u32[]', space=smem, size = 0x4, offset = 0x4, fixed_abs, tag = 'smem constant byte address 0x4 - core index']
  #allocation1 [shape = 'u32[72,128]{1,0:T(1,128)}', space=vmem, size = 0x9000, scoped, tag = 'internal scratch']
  #allocation2 [shape = 'f32[8,128]{1,0:T(8,128)}', space=vmem, size = 0x1000, scoped, tag = 'scratch operand']
  %s0 = inlined_call_operand.hbm [shape: f32[5], index: 0, kind: input, shape index: {}]
  %s1 = inlined_call_operand.hbm [shape: f32[16,32], index: 1, kind: input, shape index: {}]
  %s2 = inlined_call_operand.hbm [shape: f32[16,32], index: 2, kind: input, shape index: {}]
  %s3 = inlined_call_operand.vmem [shape: f32[1,16], index: 3, kind: input, shape index: {}]
  %s4 = inlined_call_operand.hbm [shape: f32[1,8,128], index: 4, kind: output, shape index: {}]
  %s5 = sld [smem:[#allocation0]]
  $region46: #{tpu_custom_call.1} parent=0
    _
  %s7 = ssub.s32 1, %s5
  %s8 = scalar_select 0, %s7, %s5
  $region1: #{tpu_custom_call.1} parent=0
    #allocation3 [shape = 'u8[512]{0}', space=smem, size = 0x200, scoped, tag = 'input window, operand 0, single buffered']
    #allocation4 [shape = 's32[1]{0}', space=sflag, size = 0x4, scoped, tag = 'scoped memory for tpu_custom_call.1']
    #allocation5 [shape = 's32[1]{0}', space=sflag, size = 0x4, scoped, tag = 'scoped memory for tpu_custom_call.1']
    #allocation6 [shape = 's32[1]{0}', space=sflag, size = 0x4, scoped, tag = 'scoped memory for tpu_custom_call.1']
    #allocation7 [shape = 'u8[8192]{0}', space=vmem, size = 0x2000, scoped, tag = 'input window, operand 1, single buffered']
    #allocation8 [shape = 'u8[8192]{0}', space=vmem, size = 0x2000, scoped, tag = 'input window, operand 2, single buffered']
    #allocation9 [shape = 's32[1]{0}', space=sflag, size = 0x4, scoped, tag = 'scoped memory for tpu_custom_call.1']
    #allocation10 [shape = 'u8[4096]{0}', space=vmem, size = 0x1000, scoped, tag = 'output window, operand 0, single buffered']
    %9 = vsyncpa [#allocation6], 0
    %10 = vsyncpa [#allocation4], 0
    %11 = vsyncpa [#allocation9], 0
    %12 = vsyncpa [#allocation5], 0
    // Predicated region
    $region2: #{tpu_custom_call.1} parent=1 // pred_check
      _
    $region3: #{tpu_custom_call.1} parent=1 // pred_check_branch
      %14 = sbr.rel (0) target = $region5
    $region4: #{tpu_custom_call.1} parent=1 // pred_region
      %16 = vsyncadd [#allocation6], 0
      %s18 = sshll.u32 %s0, 4
      %s19 = int_to_ptr.hbm [resolvable:$true] %s18
      %21 = dma.hbm_to_smem %s19, 16, [#allocation3], [#allocation6]
    $region5: #{tpu_custom_call.1} parent=1 // pred_fallthru
      _
    // Predicated region
    $region6: #{tpu_custom_call.1} parent=1 // pred_check
      _
    $region7: #{tpu_custom_call.1} parent=1 // pred_check_branch
      %23 = sbr.rel (0) target = $region9
    $region8: #{tpu_custom_call.1} parent=1 // pred_region
      %25 = vsyncadd [#allocation4], 0
      %s26 = sshll.u32 %s1, 4
      %s27 = int_to_ptr.hbm [resolvable:$true] %s26
      %s28 = sshll.u32 [#allocation7], 4
      %s29 = int_to_ptr.vmem [resolvable:$true] %s28
      %34 = dma.hbm_to_vmem [thread:$0]  %s27, 256, %s29, [#allocation4], 128, 128, 8
    $region9: #{tpu_custom_call.1} parent=1 // pred_fallthru
      _
    // Predicated region
    $region10: #{tpu_custom_call.1} parent=1 // pred_check
      _
    $region11: #{tpu_custom_call.1} parent=1 // pred_check_branch
      %36 = sbr.rel (0) target = $region13
    $region12: #{tpu_custom_call.1} parent=1 // pred_region
      %38 = vsyncadd [#allocation9], 0
      %s39 = sshll.u32 %s2, 4
      %s40 = int_to_ptr.hbm [resolvable:$true] %s39
      %s41 = sshll.u32 [#allocation8], 4
      %s42 = int_to_ptr.vmem [resolvable:$true] %s41
      %47 = dma.hbm_to_vmem [thread:$0]  %s40, 256, %s42, [#allocation9], 128, 128, 8
    $region13: #{tpu_custom_call.1} parent=1 // pred_fallthru
      _
    // Predicated region
    $region14: #{tpu_custom_call.1} parent=1 // pred_check
      _
    $region15: #{tpu_custom_call.1} parent=1 // pred_check_branch
      %49 = sbr.rel (0) target = $region17
    $region16: #{tpu_custom_call.1} parent=1 // pred_region
      _
    $region17: #{tpu_custom_call.1} parent=1 // pred_fallthru
      _
    // Predicated region
    $region18: #{tpu_custom_call.1} parent=1 // pred_check
      _
    $region19: #{tpu_custom_call.1} parent=1 // pred_check_branch
      %51 = sbr.rel (0) target = $region21
    $region20: #{tpu_custom_call.1} parent=1 // pred_region
      %53 = dma.done [#allocation6], 16
    $region21: #{tpu_custom_call.1} parent=1 // pred_fallthru
      _
    // Predicated region
    $region22: #{tpu_custom_call.1} parent=1 // pred_check
      _
    $region23: #{tpu_custom_call.1} parent=1 // pred_check_branch
      %55 = sbr.rel (0) target = $region25
    $region24: #{tpu_custom_call.1} parent=1 // pred_region
      %57 = dma.done [#allocation4], 256
    $region25: #{tpu_custom_call.1} parent=1 // pred_fallthru
      _
    // Predicated region
    $region26: #{tpu_custom_call.1} parent=1 // pred_check
      _
    $region27: #{tpu_custom_call.1} parent=1 // pred_check_branch
      %59 = sbr.rel (0) target = $region29
    $region28: #{tpu_custom_call.1} parent=1 // pred_region
      %61 = dma.done [#allocation9], 256
    $region29: #{tpu_custom_call.1} parent=1 // pred_fallthru
      _
    %62 = sfence
    %p63 = scmp.eq.s32.totalorder 0, 0
    // Predicated region
    $region30: #{tpu_custom_call.1} parent=1 // pred_check
      %p64 = pneg %p63
    $region31: #{tpu_custom_call.1} parent=1 // pred_check_branch
      %66 = sbr.rel (%p64) target = $region33
    $region32: #{tpu_custom_call.1} parent=1 // pred_region
      %67 = vst [vmem:[#allocation2] sm:$0xff] 0.0
    $region33: #{tpu_custom_call.1} parent=1 // pred_fallthru
      _
    %v68 = vld [vmem:[#allocation7] sm:$0xff]
    %v69 = vld [vmem:[#allocation7 + $0x8] sm:$0xff]
    %v70 = vld [vmem:[#allocation8] sm:$0xff]
    %v71 = vld [vmem:[#allocation8 + $0x8] sm:$0xff]
    %vm72 = vcmask 261120
    %v74 = vsel %vm72, %v68, 0
    %v77 = vsel %vm72, %v69, 0
    %v80 = vsel %vm72, %v70, 0
    %v83 = vsel %vm72, %v71, 0
    %85 = vmatpush.xpose.msra.mxu0 0.0
    %86 = vmatpush.xpose.msra.mxu0 0.0
    %87 = vmatpush.xpose.msra.mxu0 0.0
    %88 = vmatpush.xpose.msra.mxu0 0.0
    %89 = vmatpush.xpose.msra.mxu0 0.0
    %90 = vmatpush.xpose.msra.mxu0 0.0
    %91 = vmatpush.xpose.msra.mxu0 0.0
    %92 = vmatpush.xpose.msra.mxu0 0.0
    %93 = vmatpush.xpose.msra.mxu0 0.0
    %94 = vmatpush.xpose.msra.mxu0 0.0
    %95 = vmatpush.xpose.msra.mxu0 0.0
    %96 = vmatpush.xpose.msra.mxu0 0.0
    %97 = vmatpush.xpose.msra.mxu0 0.0
    %98 = vmatpush.xpose.msra.mxu0 0.0
    %99 = vmatpush.xpose.msra.mxu0 %v83
    %100 = vmatpush.xpose.msra.mxu0 %v80
    %101 = vmatmul.f32.gmra.mxu0 %v74
    %v102 = vpop.f32.mrf.mxu0
    %v103 = vadd.f32 0.0, %v102
    %104 = vmatmul.f32.gmra.mxu0 %v77
    %v105 = vpop.f32.mrf.mxu0
    %v106 = vadd.f32 0.0, %v105
    %107 = vdwg.mxu0
    %v108 = vmul.f32 %v68, %v68
    %v109 = vmul.f32 %v69, %v69
    %v110 = vsel %vm72, %v108, 0.0
    %111 = vadd.xlane.f32.xlu0 %v110
    %v112 = vpop.xlane.xlu0 %111
    %v113 = vsel %vm72, %v109, 0.0
    %114 = vadd.xlane.f32.xlu0 %v113
    %v115 = vpop.xlane.xlu0 %114
    %v116 = vld [vmem:[%s3] sm:$0x1]
    %v118 = vperm.slane %v116, 0
    %v120 = vadd.f32 %v112, %v118
    %v121 = vadd.f32 %v115, %v118
    %v122 = vmul.f32 %v103, 2.0
    %v123 = vmul.f32 %v106, 2.0
    %v124 = vsub.f32 %v120, %v122
    %v125 = vsub.f32 %v121, %v123
    %v126 = vmax.f32 %v124, 0.0
    %v127 = vmax.f32 %v125, 0.0
    %s128 = sld [smem:[#allocation3]]
    %v129 = vstv %s128
    %v130 = vmul.f32 %v126, %v129
    %v131 = vmul.f32 %v127, %v129
    %v132 = vmul.f32 %v130, 1.442695
    %v133 = vpow.pop %v132
    %v134 = vmul.f32 %v131, 1.442695
    %v135 = vpow.pop %v134
    %s136 = sld [smem:[#allocation3 + $0x1]]
    %v137 = vstv %s136
    %v138 = vmul.f32 %v126, %v137
    %v139 = vmul.f32 %v127, %v137
    %v140 = vmul.f32 %v138, 1.442695
    %v141 = vpow.pop %v140
    %v142 = vmul.f32 %v139, 1.442695
    %v143 = vpow.pop %v142
    %v144 = vadd.f32 %v133, %v141
    %v145 = vadd.f32 %v135, %v143
    %s146 = sld [smem:[#allocation3 + $0x2]]
    %v147 = vstv %s146
    %v148 = vmul.f32 %v126, %v147
    %v149 = vmul.f32 %v127, %v147
    %v150 = vmul.f32 %v148, 1.442695
    %v151 = vpow.pop %v150
    %v152 = vmul.f32 %v149, 1.442695
    %v153 = vpow.pop %v152
    %v154 = vadd.f32 %v144, %v151
    %v155 = vadd.f32 %v145, %v153
    %s156 = sld [smem:[#allocation3 + $0x3]]
    %v157 = vstv %s156
    %v158 = vmul.f32 %v126, %v157
    %v159 = vmul.f32 %v127, %v157
    %v160 = vmul.f32 %v158, 1.442695
    %v161 = vpow.pop %v160
    %v162 = vmul.f32 %v159, 1.442695
    %v163 = vpow.pop %v162
    %v164 = vadd.f32 %v154, %v161
    %v165 = vadd.f32 %v155, %v163
    %s166 = sld [smem:[#allocation3 + $0x4]]
    %v167 = vstv %s166
    %v168 = vmul.f32 %v126, %v167
    %v169 = vmul.f32 %v127, %v167
    %v170 = vmul.f32 %v168, 1.442695
    %v171 = vpow.pop %v170
    %v172 = vmul.f32 %v169, 1.442695
    %v173 = vpow.pop %v172
    %v174 = vadd.f32 %v164, %v171
    %v175 = vadd.f32 %v165, %v173
    %s176 = smul.u32 0, 16
    %v177 = vlaneseq
    %v178 = vshrl.u32 %v177, 7
    %v179 = vadd.s32 %v178, 8
    %v180 = vstv %s176
    %v181 = vadd.s32 %v180, %v178
    %v182 = vadd.s32 %v180, %v179
    %s183 = smul.u32 0, 16
    %v184 = vlaneseq
    %v185 = vand.u32 %v184, 127
    %v186 = vstv %s183
    %v187 = vadd.s32 %v186, %v185
    %vm188 = vcmp.lt.s32.totalorder %v181, 8
    %vm189 = vcmp.lt.s32.totalorder %v182, 8
    %vm190 = vcmp.lt.s32.totalorder %v181, 16
    %vm191 = vcmp.lt.s32.totalorder %v182, 16
    %v192 = vsel %vm190, -1.0, 0.0
    %v193 = vsel %vm191, -1.0, 0.0
    %v194 = vsel %vm188, 1.0, %v192
    %v195 = vsel %vm189, 1.0, %v193
    %vm196 = vcmp.lt.s32.totalorder %v187, 8
    %vm197 = vcmp.lt.s32.totalorder %v187, 16
    %v198 = vsel %vm197, -1.0, 0.0
    %v199 = vsel %vm196, 1.0, %v198
    %v200 = vmul.f32 %v174, %v199
    %v201 = vmul.f32 %v175, %v199
    %vm202 = vcmask 130048
    %v203 = vsel %vm202, %v200, 0.0
    %204 = vadd.xlane.f32.xlu0 %v203
    %v205 = vpop.xlane.xlu0 %204
    %v206 = vsel %vm202, %v201, 0.0
    %207 = vadd.xlane.f32.xlu0 %v206
    %v208 = vpop.xlane.xlu0 %207
    %v209 = vld [vmem:[#allocation2] sm:$0xff]
    %v210 = vmul.f32 %v205, %v194
    %v211 = vmul.f32 %v208, %v195
    %vm212 = vcmask 7168
    %v213 = vsel %vm212, %v210, 0.0
    %v214 = vsel %vm212, %v211, 0.0
    %v215 = vadd.f32 %v213, %v214
    %216 = vadd.xlane.f32.xlu0 %v215
    %v217 = vpop.xlane.xlu0 %216
    %v218 = vrot.slane %v217, 4
    %v219 = vadd.f32 %v217, %v218
    %v220 = vrot.slane %v219, 2
    %v221 = vadd.f32 %v219, %v220
    %v222 = vrot.slane %v221, 1
    %v223 = vadd.f32 %v221, %v222
    %s224 = vtos %v223
    %v225 = vstv %s224
    %v226 = vadd.f32 %v209, %v225
    %227 = vst [vmem:[#allocation2] sm:$0xff] %v226
    // Predicated region
    $region34: #{tpu_custom_call.1} parent=1 // pred_check
      %p228 = pneg %p63
    $region35: #{tpu_custom_call.1} parent=1 // pred_check_branch
      %230 = sbr.rel (%p228) target = $region37
    $region36: #{tpu_custom_call.1} parent=1 // pred_region
      %v231 = vld [vmem:[#allocation2] sm:$0xff]
      %232 = vst [vmem:[#allocation10] sm:$0xff] %v231
    $region37: #{tpu_custom_call.1} parent=1 // pred_fallthru
      _
    // Predicated region
    $region38: #{tpu_custom_call.1} parent=1 // pred_check
      _
    $region39: #{tpu_custom_call.1} parent=1 // pred_check_branch
      %234 = sbr.rel (0) target = $region41
    $region40: #{tpu_custom_call.1} parent=1 // pred_region
      %236 = vsyncadd [#allocation5], 0
      %s238 = sshll.u32 [#allocation10], 4
      %s239 = int_to_ptr.vmem [resolvable:$true] %s238
      %s240 = sshll.u32 %s4, 4
      %s241 = int_to_ptr.hbm [resolvable:$true] %s240
      %243 = dma.vmem_to_hbm [thread:$0]  %s239, 128, %s241, [#allocation5]
    $region41: #{tpu_custom_call.1} parent=1 // pred_fallthru
      _
    // Predicated region
    $region42: #{tpu_custom_call.1} parent=1 // pred_check
      _
    $region43: #{tpu_custom_call.1} parent=1 // pred_check_branch
      %245 = sbr.rel (0) target = $region45
    $region44: #{tpu_custom_call.1} parent=1 // pred_region
      %247 = dma.done [#allocation5], 128
    $region45: #{tpu_custom_call.1} parent=1 // pred_fallthru
      _
    %248 = vsyncpa [#allocation4], 1
    %249 = vsyncpa [#allocation9], 1
    %250 = vsyncpa [#allocation5], 1
    %251 = vsyncpa [#allocation6], 1

</llo_original>
